<compile_context>
chip_gen: v7x
topology: tpu7x:2x2x1
jax: 0.10.0
libtpu: 0.0.40
codegen_flags: <defaults>
</compile_context>

<pallas_src>
import jax
import jax.numpy as jnp
from jax.experimental import pallas as pl
from jax.experimental.pallas import tpu as pltpu


def _ff_kernel(x_ref, w1_ref, b1_ref, w2_ref, b2_ref, o_ref):
    """x_ref: [IN, TILE_B] (VMEM).  w1:[HID,IN], b1:[HID], w2:[OUT,HID], b2:[OUT] in SMEM.
    o_ref: [OUT, TILE_B] (VMEM)."""
    HID, IN = w1_ref.shape
    OUT = w2_ref.shape[0]
    tb = x_ref.shape[1]

    # Load the IN rows of the input tile once; each row is a [1, TILE_B] lane-dense strip.
    xrows = [x_ref[i:i + 1, :] for i in range(IN)]

    # Hidden layer: HID rows of [1, TILE_B], scalar-broadcast FMAs on the VPU + ReLU.
    hidden = []
    for h in range(HID):
        acc = b1_ref[h] + jnp.zeros((1, tb), jnp.float32)
        for i in range(IN):
            acc = acc + w1_ref[h, i] * xrows[i]
        hidden.append(jnp.maximum(acc, 0.0))

    # Output layer: OUT rows of [1, TILE_B].
    for o in range(OUT):
        out = b2_ref[o] + jnp.zeros((1, tb), jnp.float32)
        for h in range(HID):
            out = out + w2_ref[o, h] * hidden[h]
        o_ref[o:o + 1, :] = out.astype(o_ref.dtype)


def _round_up(n, m):
    return ((n + m - 1) // m) * m


def action_conditioned_ff(x, w1, b1, w2, b2, tile_b=2048):
    """Forward pass of Action_Conditioned_FF.

    x : [B, IN] float32 (standard PyTorch batch-major input)
    w1: [HID, IN], b1: [HID]   (PyTorch nn.Linear layout)
    w2: [OUT, HID], b2: [OUT]
    returns [B, OUT] float32
    """
    B, IN = x.shape
    HID = w1.shape[0]
    OUT = w2.shape[0]

    # Batch-on-lanes layout; lane tile must be a multiple of 128.
    tb = min(_round_up(B, 128), _round_up(tile_b, 128))
    Bp = _round_up(B, tb)

    xt = x.T  # [IN, B] — layout plumbing so the kernel sees a lane-dense slab.
    if Bp != B:
        xt = jnp.pad(xt, ((0, 0), (0, Bp - B)))

    grid = (Bp // tb,)
    smem_spec = pl.BlockSpec(memory_space=pltpu.MemorySpace.SMEM)

    out_t = pl.pallas_call(
        _ff_kernel,
        out_shape=jax.ShapeDtypeStruct((OUT, Bp), jnp.float32),
        grid=grid,
        in_specs=[
            pl.BlockSpec((IN, tb), lambda j: (0, j)),   # x tile   [IN, tb]
            smem_spec,                                  # w1 (SMEM resident)
            smem_spec,                                  # b1
            smem_spec,                                  # w2
            smem_spec,                                  # b2
        ],
        out_specs=pl.BlockSpec((OUT, tb), lambda j: (0, j)),
        compiler_params=pltpu.CompilerParams(
            dimension_semantics=("parallel",)),
    )(xt, w1, b1, w2, b2)

    # Drop batch padding and return batch-major [B, OUT].
    return out_t[:, :B].T


def init_params(key, input_size=6, hidden_size=6, output_size=1):
    """Deterministic init mimicking torch.nn.Linear defaults (uniform +-1/sqrt(fan_in)),
    stored in PyTorch layout: W[out_features, in_features], b[out_features]."""
    k1, k2, k3, k4 = jax.random.split(key, 4)
    bound1 = 1.0 / jnp.sqrt(float(input_size))
    bound2 = 1.0 / jnp.sqrt(float(hidden_size))
    w1 = jax.random.uniform(k1, (hidden_size, input_size), jnp.float32, -bound1, bound1)
    b1 = jax.random.uniform(k2, (hidden_size,), jnp.float32, -bound1, bound1)
    w2 = jax.random.uniform(k3, (output_size, hidden_size), jnp.float32, -bound2, bound2)
    b2 = jax.random.uniform(k4, (output_size,), jnp.float32, -bound2, bound2)
    return w1, b1, w2, b2


def reference(x, w1, b1, w2, b2):
    h = jnp.maximum(x @ w1.T + b1, 0.0)
    return h @ w2.T + b2


if __name__ == "__main__":
    key = jax.random.PRNGKey(0)
    k_x, k_x2, k_p = jax.random.split(key, 3)

    IN, HID, OUT = 6, 6, 1
    w1, b1, w2, b2 = init_params(k_p, IN, HID, OUT)

    # Case 1: batch not a multiple of the tile -> exercises multi-step grid + padding.
    B1 = 300
    x1 = jax.random.normal(k_x, (B1, IN), jnp.float32)
    out1 = jax.block_until_ready(action_conditioned_ff(x1, w1, b1, w2, b2, tile_b=128))
    ref1 = reference(x1, w1, b1, w2, b2)
    assert out1.shape == (B1, OUT), out1.shape
    assert jnp.allclose(out1, ref1, atol=1e-5, rtol=1e-5)

    # Case 2: tiny batch (like the original module's use case) -> single padded tile.
    B2 = 8
    x2 = jax.random.normal(k_x2, (B2, IN), jnp.float32)
    out2 = jax.block_until_ready(action_conditioned_ff(x2, w1, b1, w2, b2))
    ref2 = reference(x2, w1, b1, w2, b2)
    assert out2.shape == (B2, OUT), out2.shape
    assert jnp.allclose(out2, ref2, atol=1e-5, rtol=1e-5)

    print("KERNEL_OK")
</pallas_src>

<mosaic_0001>
module attributes {stable_mosaic.version = 11 : i64} {
  func.func @_ff_kernel(%arg0: i32, %arg1: memref<6x128xf32, #tpu.memory_space<vmem>>, %arg2: memref<6x6xf32, #tpu.memory_space<smem>>, %arg3: memref<6xf32, #tpu.memory_space<smem>>, %arg4: memref<1x6xf32, #tpu.memory_space<smem>>, %arg5: memref<1xf32, #tpu.memory_space<smem>>, %arg6: memref<1x128xf32, #tpu.memory_space<vmem>>) attributes {dimension_semantics = [#tpu.dimension_semantics<parallel>], iteration_bounds = array<i64: 3>, scalar_prefetch = 0 : i64, scratch_operands = 0 : i64, tpu.core_type = #tpu.core_type<tc>, window_params = [{transform_indices = @transform_0, window_bounds = array<i64: 6, 128>}, {transform_indices = @transform_1, window_bounds = array<i64: 6, 6>}, {transform_indices = @transform_2, window_bounds = array<i64: 6>}, {transform_indices = @transform_3, window_bounds = array<i64: 1, 6>}, {transform_indices = @transform_4, window_bounds = array<i64: 1>}, {transform_indices = @transform_5, window_bounds = array<i64: 1, 128>}]} {
    %c0 = arith.constant 0 : index
    %c0_0 = arith.constant 0 : index
    %0 = vector.load %arg1[%c0, %c0_0] : memref<6x128xf32, #tpu.memory_space<vmem>>, vector<1x128xf32>
    %c1 = arith.constant 1 : index
    %c0_1 = arith.constant 0 : index
    %1 = vector.load %arg1[%c1, %c0_1] : memref<6x128xf32, #tpu.memory_space<vmem>>, vector<1x128xf32>
    %c2 = arith.constant 2 : index
    %c0_2 = arith.constant 0 : index
    %2 = vector.load %arg1[%c2, %c0_2] : memref<6x128xf32, #tpu.memory_space<vmem>>, vector<1x128xf32>
    %c3 = arith.constant 3 : index
    %c0_3 = arith.constant 0 : index
    %3 = vector.load %arg1[%c3, %c0_3] : memref<6x128xf32, #tpu.memory_space<vmem>>, vector<1x128xf32>
    %c4 = arith.constant 4 : index
    %c0_4 = arith.constant 0 : index
    %4 = vector.load %arg1[%c4, %c0_4] : memref<6x128xf32, #tpu.memory_space<vmem>>, vector<1x128xf32>
    %c5 = arith.constant 5 : index
    %c0_5 = arith.constant 0 : index
    %5 = vector.load %arg1[%c5, %c0_5] : memref<6x128xf32, #tpu.memory_space<vmem>>, vector<1x128xf32>
    %c0_6 = arith.constant 0 : index
    %6 = memref.load %arg3[%c0_6] : memref<6xf32, #tpu.memory_space<smem>>
    %cst = arith.constant 0.000000e+00 : f32
    %7 = vector.broadcast %cst : f32 to vector<1x128xf32>
    %8 = vector.broadcast %6 : f32 to vector<1x128xf32>
    %9 = arith.addf %8, %7 : vector<1x128xf32>
    %c0_7 = arith.constant 0 : index
    %c0_8 = arith.constant 0 : index
    %10 = memref.load %arg2[%c0_7, %c0_8] : memref<6x6xf32, #tpu.memory_space<smem>>
    %11 = vector.broadcast %10 : f32 to vector<1x128xf32>
    %12 = arith.mulf %11, %0 : vector<1x128xf32>
    %13 = arith.addf %9, %12 : vector<1x128xf32>
    %c0_9 = arith.constant 0 : index
    %c1_10 = arith.constant 1 : index
    %14 = memref.load %arg2[%c0_9, %c1_10] : memref<6x6xf32, #tpu.memory_space<smem>>
    %15 = vector.broadcast %14 : f32 to vector<1x128xf32>
    %16 = arith.mulf %15, %1 : vector<1x128xf32>
    %17 = arith.addf %13, %16 : vector<1x128xf32>
    %c0_11 = arith.constant 0 : index
    %c2_12 = arith.constant 2 : index
    %18 = memref.load %arg2[%c0_11, %c2_12] : memref<6x6xf32, #tpu.memory_space<smem>>
    %19 = vector.broadcast %18 : f32 to vector<1x128xf32>
    %20 = arith.mulf %19, %2 : vector<1x128xf32>
    %21 = arith.addf %17, %20 : vector<1x128xf32>
    %c0_13 = arith.constant 0 : index
    %c3_14 = arith.constant 3 : index
    %22 = memref.load %arg2[%c0_13, %c3_14] : memref<6x6xf32, #tpu.memory_space<smem>>
    %23 = vector.broadcast %22 : f32 to vector<1x128xf32>
    %24 = arith.mulf %23, %3 : vector<1x128xf32>
    %25 = arith.addf %21, %24 : vector<1x128xf32>
    %c0_15 = arith.constant 0 : index
    %c4_16 = arith.constant 4 : index
    %26 = memref.load %arg2[%c0_15, %c4_16] : memref<6x6xf32, #tpu.memory_space<smem>>
    %27 = vector.broadcast %26 : f32 to vector<1x128xf32>
    %28 = arith.mulf %27, %4 : vector<1x128xf32>
    %29 = arith.addf %25, %28 : vector<1x128xf32>
    %c0_17 = arith.constant 0 : index
    %c5_18 = arith.constant 5 : index
    %30 = memref.load %arg2[%c0_17, %c5_18] : memref<6x6xf32, #tpu.memory_space<smem>>
    %31 = vector.broadcast %30 : f32 to vector<1x128xf32>
    %32 = arith.mulf %31, %5 : vector<1x128xf32>
    %33 = arith.addf %29, %32 : vector<1x128xf32>
    %cst_19 = arith.constant 0.000000e+00 : f32
    %34 = vector.broadcast %cst_19 : f32 to vector<1x128xf32>
    %35 = arith.maximumf %33, %34 : vector<1x128xf32>
    %c1_20 = arith.constant 1 : index
    %36 = memref.load %arg3[%c1_20] : memref<6xf32, #tpu.memory_space<smem>>
    %cst_21 = arith.constant 0.000000e+00 : f32
    %37 = vector.broadcast %cst_21 : f32 to vector<1x128xf32>
    %38 = vector.broadcast %36 : f32 to vector<1x128xf32>
    %39 = arith.addf %38, %37 : vector<1x128xf32>
    %c1_22 = arith.constant 1 : index
    %c0_23 = arith.constant 0 : index
    %40 = memref.load %arg2[%c1_22, %c0_23] : memref<6x6xf32, #tpu.memory_space<smem>>
    %41 = vector.broadcast %40 : f32 to vector<1x128xf32>
    %42 = arith.mulf %41, %0 : vector<1x128xf32>
    %43 = arith.addf %39, %42 : vector<1x128xf32>
    %c1_24 = arith.constant 1 : index
    %c1_25 = arith.constant 1 : index
    %44 = memref.load %arg2[%c1_24, %c1_25] : memref<6x6xf32, #tpu.memory_space<smem>>
    %45 = vector.broadcast %44 : f32 to vector<1x128xf32>
    %46 = arith.mulf %45, %1 : vector<1x128xf32>
    %47 = arith.addf %43, %46 : vector<1x128xf32>
    %c1_26 = arith.constant 1 : index
    %c2_27 = arith.constant 2 : index
    %48 = memref.load %arg2[%c1_26, %c2_27] : memref<6x6xf32, #tpu.memory_space<smem>>
    %49 = vector.broadcast %48 : f32 to vector<1x128xf32>
    %50 = arith.mulf %49, %2 : vector<1x128xf32>
    %51 = arith.addf %47, %50 : vector<1x128xf32>
    %c1_28 = arith.constant 1 : index
    %c3_29 = arith.constant 3 : index
    %52 = memref.load %arg2[%c1_28, %c3_29] : memref<6x6xf32, #tpu.memory_space<smem>>
    %53 = vector.broadcast %52 : f32 to vector<1x128xf32>
    %54 = arith.mulf %53, %3 : vector<1x128xf32>
    %55 = arith.addf %51, %54 : vector<1x128xf32>
    %c1_30 = arith.constant 1 : index
    %c4_31 = arith.constant 4 : index
    %56 = memref.load %arg2[%c1_30, %c4_31] : memref<6x6xf32, #tpu.memory_space<smem>>
    %57 = vector.broadcast %56 : f32 to vector<1x128xf32>
    %58 = arith.mulf %57, %4 : vector<1x128xf32>
    %59 = arith.addf %55, %58 : vector<1x128xf32>
    %c1_32 = arith.constant 1 : index
    %c5_33 = arith.constant 5 : index
    %60 = memref.load %arg2[%c1_32, %c5_33] : memref<6x6xf32, #tpu.memory_space<smem>>
    %61 = vector.broadcast %60 : f32 to vector<1x128xf32>
    %62 = arith.mulf %61, %5 : vector<1x128xf32>
    %63 = arith.addf %59, %62 : vector<1x128xf32>
    %cst_34 = arith.constant 0.000000e+00 : f32
    %64 = vector.broadcast %cst_34 : f32 to vector<1x128xf32>
    %65 = arith.maximumf %63, %64 : vector<1x128xf32>
    %c2_35 = arith.constant 2 : index
    %66 = memref.load %arg3[%c2_35] : memref<6xf32, #tpu.memory_space<smem>>
    %cst_36 = arith.constant 0.000000e+00 : f32
    %67 = vector.broadcast %cst_36 : f32 to vector<1x128xf32>
    %68 = vector.broadcast %66 : f32 to vector<1x128xf32>
    %69 = arith.addf %68, %67 : vector<1x128xf32>
    %c2_37 = arith.constant 2 : index
    %c0_38 = arith.constant 0 : index
    %70 = memref.load %arg2[%c2_37, %c0_38] : memref<6x6xf32, #tpu.memory_space<smem>>
    %71 = vector.broadcast %70 : f32 to vector<1x128xf32>
    %72 = arith.mulf %71, %0 : vector<1x128xf32>
    %73 = arith.addf %69, %72 : vector<1x128xf32>
    %c2_39 = arith.constant 2 : index
    %c1_40 = arith.constant 1 : index
    %74 = memref.load %arg2[%c2_39, %c1_40] : memref<6x6xf32, #tpu.memory_space<smem>>
    %75 = vector.broadcast %74 : f32 to vector<1x128xf32>
    %76 = arith.mulf %75, %1 : vector<1x128xf32>
    %77 = arith.addf %73, %76 : vector<1x128xf32>
    %c2_41 = arith.constant 2 : index
    %c2_42 = arith.constant 2 : index
    %78 = memref.load %arg2[%c2_41, %c2_42] : memref<6x6xf32, #tpu.memory_space<smem>>
    %79 = vector.broadcast %78 : f32 to vector<1x128xf32>
    %80 = arith.mulf %79, %2 : vector<1x128xf32>
    %81 = arith.addf %77, %80 : vector<1x128xf32>
    %c2_43 = arith.constant 2 : index
    %c3_44 = arith.constant 3 : index
    %82 = memref.load %arg2[%c2_43, %c3_44] : memref<6x6xf32, #tpu.memory_space<smem>>
    %83 = vector.broadcast %82 : f32 to vector<1x128xf32>
    %84 = arith.mulf %83, %3 : vector<1x128xf32>
    %85 = arith.addf %81, %84 : vector<1x128xf32>
    %c2_45 = arith.constant 2 : index
    %c4_46 = arith.constant 4 : index
    %86 = memref.load %arg2[%c2_45, %c4_46] : memref<6x6xf32, #tpu.memory_space<smem>>
    %87 = vector.broadcast %86 : f32 to vector<1x128xf32>
    %88 = arith.mulf %87, %4 : vector<1x128xf32>
    %89 = arith.addf %85, %88 : vector<1x128xf32>
    %c2_47 = arith.constant 2 : index
    %c5_48 = arith.constant 5 : index
    %90 = memref.load %arg2[%c2_47, %c5_48] : memref<6x6xf32, #tpu.memory_space<smem>>
    %91 = vector.broadcast %90 : f32 to vector<1x128xf32>
    %92 = arith.mulf %91, %5 : vector<1x128xf32>
    %93 = arith.addf %89, %92 : vector<1x128xf32>
    %cst_49 = arith.constant 0.000000e+00 : f32
    %94 = vector.broadcast %cst_49 : f32 to vector<1x128xf32>
    %95 = arith.maximumf %93, %94 : vector<1x128xf32>
    %c3_50 = arith.constant 3 : index
    %96 = memref.load %arg3[%c3_50] : memref<6xf32, #tpu.memory_space<smem>>
    %cst_51 = arith.constant 0.000000e+00 : f32
    %97 = vector.broadcast %cst_51 : f32 to vector<1x128xf32>
    %98 = vector.broadcast %96 : f32 to vector<1x128xf32>
    %99 = arith.addf %98, %97 : vector<1x128xf32>
    %c3_52 = arith.constant 3 : index
    %c0_53 = arith.constant 0 : index
    %100 = memref.load %arg2[%c3_52, %c0_53] : memref<6x6xf32, #tpu.memory_space<smem>>
    %101 = vector.broadcast %100 : f32 to vector<1x128xf32>
    %102 = arith.mulf %101, %0 : vector<1x128xf32>
    %103 = arith.addf %99, %102 : vector<1x128xf32>
    %c3_54 = arith.constant 3 : index
    %c1_55 = arith.constant 1 : index
    %104 = memref.load %arg2[%c3_54, %c1_55] : memref<6x6xf32, #tpu.memory_space<smem>>
    %105 = vector.broadcast %104 : f32 to vector<1x128xf32>
    %106 = arith.mulf %105, %1 : vector<1x128xf32>
    %107 = arith.addf %103, %106 : vector<1x128xf32>
    %c3_56 = arith.constant 3 : index
    %c2_57 = arith.constant 2 : index
    %108 = memref.load %arg2[%c3_56, %c2_57] : memref<6x6xf32, #tpu.memory_space<smem>>
    %109 = vector.broadcast %108 : f32 to vector<1x128xf32>
    %110 = arith.mulf %109, %2 : vector<1x128xf32>
    %111 = arith.addf %107, %110 : vector<1x128xf32>
    %c3_58 = arith.constant 3 : index
    %c3_59 = arith.constant 3 : index
    %112 = memref.load %arg2[%c3_58, %c3_59] : memref<6x6xf32, #tpu.memory_space<smem>>
    %113 = vector.broadcast %112 : f32 to vector<1x128xf32>
    %114 = arith.mulf %113, %3 : vector<1x128xf32>
    %115 = arith.addf %111, %114 : vector<1x128xf32>
    %c3_60 = arith.constant 3 : index
    %c4_61 = arith.constant 4 : index
    %116 = memref.load %arg2[%c3_60, %c4_61] : memref<6x6xf32, #tpu.memory_space<smem>>
    %117 = vector.broadcast %116 : f32 to vector<1x128xf32>
    %118 = arith.mulf %117, %4 : vector<1x128xf32>
    %119 = arith.addf %115, %118 : vector<1x128xf32>
    %c3_62 = arith.constant 3 : index
    %c5_63 = arith.constant 5 : index
    %120 = memref.load %arg2[%c3_62, %c5_63] : memref<6x6xf32, #tpu.memory_space<smem>>
    %121 = vector.broadcast %120 : f32 to vector<1x128xf32>
    %122 = arith.mulf %121, %5 : vector<1x128xf32>
    %123 = arith.addf %119, %122 : vector<1x128xf32>
    %cst_64 = arith.constant 0.000000e+00 : f32
    %124 = vector.broadcast %cst_64 : f32 to vector<1x128xf32>
    %125 = arith.maximumf %123, %124 : vector<1x128xf32>
    %c4_65 = arith.constant 4 : index
    %126 = memref.load %arg3[%c4_65] : memref<6xf32, #tpu.memory_space<smem>>
    %cst_66 = arith.constant 0.000000e+00 : f32
    %127 = vector.broadcast %cst_66 : f32 to vector<1x128xf32>
    %128 = vector.broadcast %126 : f32 to vector<1x128xf32>
    %129 = arith.addf %128, %127 : vector<1x128xf32>
    %c4_67 = arith.constant 4 : index
    %c0_68 = arith.constant 0 : index
    %130 = memref.load %arg2[%c4_67, %c0_68] : memref<6x6xf32, #tpu.memory_space<smem>>
    %131 = vector.broadcast %130 : f32 to vector<1x128xf32>
    %132 = arith.mulf %131, %0 : vector<1x128xf32>
    %133 = arith.addf %129, %132 : vector<1x128xf32>
    %c4_69 = arith.constant 4 : index
    %c1_70 = arith.constant 1 : index
    %134 = memref.load %arg2[%c4_69, %c1_70] : memref<6x6xf32, #tpu.memory_space<smem>>
    %135 = vector.broadcast %134 : f32 to vector<1x128xf32>
    %136 = arith.mulf %135, %1 : vector<1x128xf32>
    %137 = arith.addf %133, %136 : vector<1x128xf32>
    %c4_71 = arith.constant 4 : index
    %c2_72 = arith.constant 2 : index
    %138 = memref.load %arg2[%c4_71, %c2_72] : memref<6x6xf32, #tpu.memory_space<smem>>
    %139 = vector.broadcast %138 : f32 to vector<1x128xf32>
    %140 = arith.mulf %139, %2 : vector<1x128xf32>
    %141 = arith.addf %137, %140 : vector<1x128xf32>
    %c4_73 = arith.constant 4 : index
    %c3_74 = arith.constant 3 : index
    %142 = memref.load %arg2[%c4_73, %c3_74] : memref<6x6xf32, #tpu.memory_space<smem>>
    %143 = vector.broadcast %142 : f32 to vector<1x128xf32>
    %144 = arith.mulf %143, %3 : vector<1x128xf32>
    %145 = arith.addf %141, %144 : vector<1x128xf32>
    %c4_75 = arith.constant 4 : index
    %c4_76 = arith.constant 4 : index
    %146 = memref.load %arg2[%c4_75, %c4_76] : memref<6x6xf32, #tpu.memory_space<smem>>
    %147 = vector.broadcast %146 : f32 to vector<1x128xf32>
    %148 = arith.mulf %147, %4 : vector<1x128xf32>
    %149 = arith.addf %145, %148 : vector<1x128xf32>
    %c4_77 = arith.constant 4 : index
    %c5_78 = arith.constant 5 : index
    %150 = memref.load %arg2[%c4_77, %c5_78] : memref<6x6xf32, #tpu.memory_space<smem>>
    %151 = vector.broadcast %150 : f32 to vector<1x128xf32>
    %152 = arith.mulf %151, %5 : vector<1x128xf32>
    %153 = arith.addf %149, %152 : vector<1x128xf32>
    %cst_79 = arith.constant 0.000000e+00 : f32
    %154 = vector.broadcast %cst_79 : f32 to vector<1x128xf32>
    %155 = arith.maximumf %153, %154 : vector<1x128xf32>
    %c5_80 = arith.constant 5 : index
    %156 = memref.load %arg3[%c5_80] : memref<6xf32, #tpu.memory_space<smem>>
    %cst_81 = arith.constant 0.000000e+00 : f32
    %157 = vector.broadcast %cst_81 : f32 to vector<1x128xf32>
    %158 = vector.broadcast %156 : f32 to vector<1x128xf32>
    %159 = arith.addf %158, %157 : vector<1x128xf32>
    %c5_82 = arith.constant 5 : index
    %c0_83 = arith.constant 0 : index
    %160 = memref.load %arg2[%c5_82, %c0_83] : memref<6x6xf32, #tpu.memory_space<smem>>
    %161 = vector.broadcast %160 : f32 to vector<1x128xf32>
    %162 = arith.mulf %161, %0 : vector<1x128xf32>
    %163 = arith.addf %159, %162 : vector<1x128xf32>
    %c5_84 = arith.constant 5 : index
    %c1_85 = arith.constant 1 : index
    %164 = memref.load %arg2[%c5_84, %c1_85] : memref<6x6xf32, #tpu.memory_space<smem>>
    %165 = vector.broadcast %164 : f32 to vector<1x128xf32>
    %166 = arith.mulf %165, %1 : vector<1x128xf32>
    %167 = arith.addf %163, %166 : vector<1x128xf32>
    %c5_86 = arith.constant 5 : index
    %c2_87 = arith.constant 2 : index
    %168 = memref.load %arg2[%c5_86, %c2_87] : memref<6x6xf32, #tpu.memory_space<smem>>
    %169 = vector.broadcast %168 : f32 to vector<1x128xf32>
    %170 = arith.mulf %169, %2 : vector<1x128xf32>
    %171 = arith.addf %167, %170 : vector<1x128xf32>
    %c5_88 = arith.constant 5 : index
    %c3_89 = arith.constant 3 : index
    %172 = memref.load %arg2[%c5_88, %c3_89] : memref<6x6xf32, #tpu.memory_space<smem>>
    %173 = vector.broadcast %172 : f32 to vector<1x128xf32>
    %174 = arith.mulf %173, %3 : vector<1x128xf32>
    %175 = arith.addf %171, %174 : vector<1x128xf32>
    %c5_90 = arith.constant 5 : index
    %c4_91 = arith.constant 4 : index
    %176 = memref.load %arg2[%c5_90, %c4_91] : memref<6x6xf32, #tpu.memory_space<smem>>
    %177 = vector.broadcast %176 : f32 to vector<1x128xf32>
    %178 = arith.mulf %177, %4 : vector<1x128xf32>
    %179 = arith.addf %175, %178 : vector<1x128xf32>
    %c5_92 = arith.constant 5 : index
    %c5_93 = arith.constant 5 : index
    %180 = memref.load %arg2[%c5_92, %c5_93] : memref<6x6xf32, #tpu.memory_space<smem>>
    %181 = vector.broadcast %180 : f32 to vector<1x128xf32>
    %182 = arith.mulf %181, %5 : vector<1x128xf32>
    %183 = arith.addf %179, %182 : vector<1x128xf32>
    %cst_94 = arith.constant 0.000000e+00 : f32
    %184 = vector.broadcast %cst_94 : f32 to vector<1x128xf32>
    %185 = arith.maximumf %183, %184 : vector<1x128xf32>
    %c0_95 = arith.constant 0 : index
    %186 = memref.load %arg5[%c0_95] : memref<1xf32, #tpu.memory_space<smem>>
    %cst_96 = arith.constant 0.000000e+00 : f32
    %187 = vector.broadcast %cst_96 : f32 to vector<1x128xf32>
    %188 = vector.broadcast %186 : f32 to vector<1x128xf32>
    %189 = arith.addf %188, %187 : vector<1x128xf32>
    %c0_97 = arith.constant 0 : index
    %c0_98 = arith.constant 0 : index
    %190 = memref.load %arg4[%c0_97, %c0_98] : memref<1x6xf32, #tpu.memory_space<smem>>
    %191 = vector.broadcast %190 : f32 to vector<1x128xf32>
    %192 = arith.mulf %191, %35 : vector<1x128xf32>
    %193 = arith.addf %189, %192 : vector<1x128xf32>
    %c0_99 = arith.constant 0 : index
    %c1_100 = arith.constant 1 : index
    %194 = memref.load %arg4[%c0_99, %c1_100] : memref<1x6xf32, #tpu.memory_space<smem>>
    %195 = vector.broadcast %194 : f32 to vector<1x128xf32>
    %196 = arith.mulf %195, %65 : vector<1x128xf32>
    %197 = arith.addf %193, %196 : vector<1x128xf32>
    %c0_101 = arith.constant 0 : index
    %c2_102 = arith.constant 2 : index
    %198 = memref.load %arg4[%c0_101, %c2_102] : memref<1x6xf32, #tpu.memory_space<smem>>
    %199 = vector.broadcast %198 : f32 to vector<1x128xf32>
    %200 = arith.mulf %199, %95 : vector<1x128xf32>
    %201 = arith.addf %197, %200 : vector<1x128xf32>
    %c0_103 = arith.constant 0 : index
    %c3_104 = arith.constant 3 : index
    %202 = memref.load %arg4[%c0_103, %c3_104] : memref<1x6xf32, #tpu.memory_space<smem>>
    %203 = vector.broadcast %202 : f32 to vector<1x128xf32>
    %204 = arith.mulf %203, %125 : vector<1x128xf32>
    %205 = arith.addf %201, %204 : vector<1x128xf32>
    %c0_105 = arith.constant 0 : index
    %c4_106 = arith.constant 4 : index
    %206 = memref.load %arg4[%c0_105, %c4_106] : memref<1x6xf32, #tpu.memory_space<smem>>
    %207 = vector.broadcast %206 : f32 to vector<1x128xf32>
    %208 = arith.mulf %207, %155 : vector<1x128xf32>
    %209 = arith.addf %205, %208 : vector<1x128xf32>
    %c0_107 = arith.constant 0 : index
    %c5_108 = arith.constant 5 : index
    %210 = memref.load %arg4[%c0_107, %c5_108] : memref<1x6xf32, #tpu.memory_space<smem>>
    %211 = vector.broadcast %210 : f32 to vector<1x128xf32>
    %212 = arith.mulf %211, %185 : vector<1x128xf32>
    %213 = arith.addf %209, %212 : vector<1x128xf32>
    %c0_109 = arith.constant 0 : index
    %c0_110 = arith.constant 0 : index
    %214 = vector.load %arg6[%c0_109, %c0_110] : memref<1x128xf32, #tpu.memory_space<vmem>>, vector<1x128xf32>
    tpu.vector_store %arg6[%c0_109, %c0_110], %213 {strides = array<i32>} : memref<1x128xf32, #tpu.memory_space<vmem>>, vector<1x128xf32>,
    return
  }
  func.func @transform_0(%arg0: i32) -> (i32, i32) {
    %c0_i32 = arith.constant 0 : i32
    %c0_i32_0 = arith.constant 0 : i32
    return %c0_i32, %arg0 : i32, i32
  }
  func.func @transform_1(%arg0: i32) -> (i32, i32) {
    %c0_i32 = arith.constant 0 : i32
    %c0_i32_0 = arith.constant 0 : i32
    %c0_i32_1 = arith.constant 0 : i32
    return %c0_i32, %c0_i32_0 : i32, i32
  }
  func.func @transform_2(%arg0: i32) -> i32 {
    %c0_i32 = arith.constant 0 : i32
    %c0_i32_0 = arith.constant 0 : i32
    return %c0_i32 : i32
  }
  func.func @transform_3(%arg0: i32) -> (i32, i32) {
    %c0_i32 = arith.constant 0 : i32
    %c0_i32_0 = arith.constant 0 : i32
    %c0_i32_1 = arith.constant 0 : i32
    return %c0_i32, %c0_i32_0 : i32, i32
  }
  func.func @transform_4(%arg0: i32) -> i32 {
    %c0_i32 = arith.constant 0 : i32
    %c0_i32_0 = arith.constant 0 : i32
    return %c0_i32 : i32
  }
  func.func @transform_5(%arg0: i32) -> (i32, i32) {
    %c0_i32 = arith.constant 0 : i32
    %c0_i32_0 = arith.constant 0 : i32
    return %c0_i32, %arg0 : i32, i32
  }
}

</mosaic_0001>

<llo_original>
// kernel: tpu_custom_call.1
$region0: #{tpu_custom_call.1}
  #allocation0 [shape = 'u32[]', space=smem, size = 0x4, offset = 0x4, fixed_abs, tag = 'smem constant byte address 0x4 - core index']
  #allocation1 [shape = 'u32[144,128]{1,0:T(1,128)}', space=vmem, size = 0x12000, scoped, tag = 'internal scratch']
  #allocation2 [shape = 'f32[1]{0:T(128)S(6)}', space=smem, size = 0x200, scoped, tag = 'scoped memory for tpu_custom_call.1']
  %s0 = inlined_call_operand.hbm [shape: f32[6,384], index: 0, kind: input, shape index: {}]
  %s1 = inlined_call_operand.hbm [shape: f32[6,6], index: 1, kind: input, shape index: {}]
  %s2 = inlined_call_operand.vmem [shape: f32[6], index: 2, kind: input, shape index: {}]
  %s3 = inlined_call_operand.vmem [shape: f32[1,6], index: 3, kind: input, shape index: {}]
  %s4 = inlined_call_operand.<no memory space> [shape: f32[1], index: 4, kind: input, shape index: {}]
  %s5 = inlined_call_operand.hbm [shape: f32[1,384], index: 5, kind: output, shape index: {}]
  %s6 = sld [smem:[#allocation0]]
  $region69: #{tpu_custom_call.1} parent=0
    _
  %s8 = ssub.s32 1, %s6
  %s9 = scalar_select 0, %s8, %s6
  %10 = sst [smem:[#allocation2]] %s4
  $region1: #{tpu_custom_call.1} parent=0
    #allocation3 [shape = 'u8[8192]{0}', space=vmem, size = 0x2000, scoped, tag = 'input window, operand 0']
    #allocation4 [shape = 's32[2]{0}', space=sflag, size = 0x8, scoped, tag = 'scoped memory for tpu_custom_call.1']
    #allocation5 [shape = 's32[2]{0}', space=sflag, size = 0x8, scoped, tag = 'scoped memory for tpu_custom_call.1']
    #allocation6 [shape = 's32[2]{0}', space=sflag, size = 0x8, scoped, tag = 'scoped memory for tpu_custom_call.1']
    #allocation7 [shape = 's32[2]{0}', space=sflag, size = 0x8, scoped, tag = 'scoped memory for tpu_custom_call.1']
    #allocation8 [shape = 'u8[4096]{0}', space=smem, size = 0x1000, scoped, tag = 'input window, operand 1, single buffered']
    #allocation9 [shape = 'u8[512]{0}', space=smem, size = 0x200, scoped, tag = 'input window, operand 2, single buffered']
    #allocation10 [shape = 'u8[512]{0}', space=smem, size = 0x200, scoped, tag = 'input window, operand 3, single buffered']
    #allocation11 [shape = 's32[1]{0}', space=sflag, size = 0x4, scoped, tag = 'scoped memory for tpu_custom_call.1']
    #allocation12 [shape = 'u8[1024]{0}', space=vmem, size = 0x400, scoped, tag = 'output window, operand 0']
    %11 = vsyncpa [#allocation4], 0
    %s12 = scalar_lea.sflag [#allocation4], 1
    %13 = vsyncpa %s12, 0
    %14 = vsyncpa [#allocation6], 0
    %15 = vsyncpa [#allocation7], 0
    %16 = vsyncpa [#allocation11], 0
    %17 = vsyncpa [#allocation5], 0
    %s18 = scalar_lea.sflag [#allocation5], 1
    %19 = vsyncpa %s18, 0
    loop: start=0, step=1, limit=5
    $region2: #{tpu_custom_call.1} parent=1 // loop_pre_header
      _
    $region3: #{tpu_custom_call.1} parent=1 // loop_header
      %s21 = sphi 0, %s25
      %p22 = scmp.ge.s32.totalorder %s21, 5
      %s31 = sphi 0, %s33
      %s34 = sphi 0, %s31
      %s35 = sphi 0, %s34
      %s51 = sphi 0, %s35
      %s55 = sphi 0, %s55
      %s57 = sphi 0, %s55
      %s58 = sphi 0, %s57
      %s72 = sphi 0, %s58
      %s76 = sphi 0, %s76
      %s78 = sphi 0, %s76
      %s79 = sphi 0, %s78
      %s93 = sphi 0, %s79
      %s97 = sphi 0, %s97
      %s99 = sphi 0, %s97
      %s100 = sphi 0, %s99
      %s114 = sphi 0, %s100
      %s118 = sphi 0, %s118
      %s120 = sphi 0, %s118
      %s121 = sphi 0, %s120
      %s135 = sphi 0, %s121
      %s141 = sphi 0, %s143
      %s144 = sphi 0, %s141
      %s145 = sphi 0, %s144
      %s161 = sphi 0, %s145
    $region4: #{tpu_custom_call.1} parent=1 // loop_header_branch
      %24 = sbr.rel (%p22) target = $region8
    $region5: #{tpu_custom_call.1} parent=1 // loop_body
      %s26 = ssub.s32 %s21, 1
      %s27 = ssub.s32 %s21, 2
      %s28 = sadd.s32 %s21, 1
      %s29 = ssub.s32 %s21, %s28
      %p30 = scmp.eq.s32.totalorder %s29, 0
      %s32 = sadd.s32 %s31, 1
      %s33 = scalar_select %p30, %s31, %s32
      %p36 = pneg %p30
      %p37 = scmp.eq.s32.totalorder %s21, 2
      %p38 = por %p36, %p37
      %p39 = scmp.ne.s32.totalorder %s31, %s34
      %p40 = scmp.eq.s32.totalorder %s21, 0
      %p41 = por %p39, %p40
      %p42 = scmp.ne.s32.totalorder %s31, %s34
      %p43 = scmp.eq.s32.totalorder %s26, 2
      %p44 = por %p42, %p43
      %p45 = scmp.ne.s32.totalorder %s34, %s35
      %p46 = scmp.eq.s32.totalorder %s26, 0
      %p47 = por %p45, %p46
      %p48 = scmp.ne.s32.totalorder %s34, %s35
      %p49 = scmp.eq.s32.totalorder %s27, 2
      %p50 = por %p48, %p49
      %p52 = scmp.ne.s32.totalorder %s35, %s51
      %p53 = scmp.eq.s32.totalorder %s27, 0
      %p54 = por %p52, %p53
      %s56 = sadd.s32 %s55, 1
      %p59 = scmp.eq.s32.totalorder %s21, 2
      %p60 = scmp.ne.s32.totalorder %s55, %s57
      %p61 = scmp.eq.s32.totalorder %s21, 0
      %p62 = por %p60, %p61
      %p63 = scmp.ne.s32.totalorder %s55, %s57
      %p64 = scmp.eq.s32.totalorder %s26, 2
      %p65 = por %p63, %p64
      %p66 = scmp.ne.s32.totalorder %s57, %s58
      %p67 = scmp.eq.s32.totalorder %s26, 0
      %p68 = por %p66, %p67
      %p69 = scmp.ne.s32.totalorder %s57, %s58
      %p70 = scmp.eq.s32.totalorder %s27, 2
      %p71 = por %p69, %p70
      %p73 = scmp.ne.s32.totalorder %s58, %s72
      %p74 = scmp.eq.s32.totalorder %s27, 0
      %p75 = por %p73, %p74
      %s77 = sadd.s32 %s76, 1
      %p80 = scmp.eq.s32.totalorder %s21, 2
      %p81 = scmp.ne.s32.totalorder %s76, %s78
      %p82 = scmp.eq.s32.totalorder %s21, 0
      %p83 = por %p81, %p82
      %p84 = scmp.ne.s32.totalorder %s76, %s78
      %p85 = scmp.eq.s32.totalorder %s26, 2
      %p86 = por %p84, %p85
      %p87 = scmp.ne.s32.totalorder %s78, %s79
      %p88 = scmp.eq.s32.totalorder %s26, 0
      %p89 = por %p87, %p88
      %p90 = scmp.ne.s32.totalorder %s78, %s79
      %p91 = scmp.eq.s32.totalorder %s27, 2
      %p92 = por %p90, %p91
      %p94 = scmp.ne.s32.totalorder %s79, %s93
      %p95 = scmp.eq.s32.totalorder %s27, 0
      %p96 = por %p94, %p95
      %s98 = sadd.s32 %s97, 1
      %p101 = scmp.eq.s32.totalorder %s21, 2
      %p102 = scmp.ne.s32.totalorder %s97, %s99
      %p103 = scmp.eq.s32.totalorder %s21, 0
      %p104 = por %p102, %p103
      %p105 = scmp.ne.s32.totalorder %s97, %s99
      %p106 = scmp.eq.s32.totalorder %s26, 2
      %p107 = por %p105, %p106
      %p108 = scmp.ne.s32.totalorder %s99, %s100
      %p109 = scmp.eq.s32.totalorder %s26, 0
      %p110 = por %p108, %p109
      %p111 = scmp.ne.s32.totalorder %s99, %s100
      %p112 = scmp.eq.s32.totalorder %s27, 2
      %p113 = por %p111, %p112
      %p115 = scmp.ne.s32.totalorder %s100, %s114
      %p116 = scmp.eq.s32.totalorder %s27, 0
      %p117 = por %p115, %p116
      %s119 = sadd.s32 %s118, 1
      %p122 = scmp.eq.s32.totalorder %s21, 2
      %p123 = scmp.ne.s32.totalorder %s118, %s120
      %p124 = scmp.eq.s32.totalorder %s21, 0
      %p125 = por %p123, %p124
      %p126 = scmp.ne.s32.totalorder %s118, %s120
      %p127 = scmp.eq.s32.totalorder %s26, 2
      %p128 = por %p126, %p127
      %p129 = scmp.ne.s32.totalorder %s120, %s121
      %p130 = scmp.eq.s32.totalorder %s26, 0
      %p131 = por %p129, %p130
      %p132 = scmp.ne.s32.totalorder %s120, %s121
      %p133 = scmp.eq.s32.totalorder %s27, 2
      %p134 = por %p132, %p133
      %p136 = scmp.ne.s32.totalorder %s121, %s135
      %p137 = scmp.eq.s32.totalorder %s27, 0
      %p138 = por %p136, %p137
      %s139 = ssub.s32 %s21, %s28
      %p140 = scmp.eq.s32.totalorder %s139, 0
      %s142 = sadd.s32 %s141, 1
      %s143 = scalar_select %p140, %s141, %s142
      %p146 = pneg %p140
      %p147 = scmp.eq.s32.totalorder %s21, 2
      %p148 = por %p146, %p147
      %p149 = scmp.ne.s32.totalorder %s141, %s144
      %p150 = scmp.eq.s32.totalorder %s21, 0
      %p151 = por %p149, %p150
      %p152 = scmp.ne.s32.totalorder %s141, %s144
      %p153 = scmp.eq.s32.totalorder %s26, 2
      %p154 = por %p152, %p153
      %p155 = scmp.ne.s32.totalorder %s144, %s145
      %p156 = scmp.eq.s32.totalorder %s26, 0
      %p157 = por %p155, %p156
      %p158 = scmp.ne.s32.totalorder %s144, %s145
      %p159 = scmp.eq.s32.totalorder %s27, 2
      %p160 = por %p158, %p159
      %p162 = scmp.ne.s32.totalorder %s145, %s161
      %p163 = scmp.eq.s32.totalorder %s27, 0
      %p164 = por %p162, %p163
      %p165 = scmp.le.s32.totalorder 1, %s21
      %p166 = scmp.lt.s32.totalorder %s21, 4
      %p167 = pnand %p165, %p166
      %p168 = pneg %p167
      // Predicated region
      $region9: #{tpu_custom_call.1} parent=5 // pred_check
        _
      $region10: #{tpu_custom_call.1} parent=5 // pred_check_branch
        %170 = sbr.rel (%p167) target = $region12
      $region11: #{tpu_custom_call.1} parent=5 // pred_region
        %s171 = ssub.s32 %s21, 1
        // Predicated region
        $region13: #{tpu_custom_call.1} parent=11 // pred_check
          %p172 = pneg %p68
        $region14: #{tpu_custom_call.1} parent=11 // pred_check_branch
          %174 = sbr.rel (%p172) target = $region16
        $region15: #{tpu_custom_call.1} parent=11 // pred_region
          %s176 = ssub.s32 128, 128
          %177 = vsyncadd [#allocation6], %s176
          %180 = dma.hbm_to_smem %s1, 128, [#allocation8], [#allocation6]
        $region16: #{tpu_custom_call.1} parent=11 // pred_fallthru
          _
        // Predicated region
        $region17: #{tpu_custom_call.1} parent=11 // pred_check
          %p181 = pneg %p89
        $region18: #{tpu_custom_call.1} parent=11 // pred_check_branch
          %183 = sbr.rel (%p181) target = $region20
        $region19: #{tpu_custom_call.1} parent=11 // pred_region
          %s185 = ssub.s32 16, 16
          %186 = vsyncadd [#allocation7], %s185
          %s188 = sshll.u32 %s2, 4
          %s189 = int_to_ptr.vmem [resolvable:$true] %s188
          %191 = dma.vmem_to_smem %s189, 16, [#allocation9], [#allocation7]
        $region20: #{tpu_custom_call.1} parent=11 // pred_fallthru
          _
        // Predicated region
        $region21: #{tpu_custom_call.1} parent=11 // pred_check
          %p192 = pneg %p110
        $region22: #{tpu_custom_call.1} parent=11 // pred_check_branch
          %194 = sbr.rel (%p192) target = $region24
        $region23: #{tpu_custom_call.1} parent=11 // pred_region
          %s196 = ssub.s32 16, 16
          %197 = vsyncadd [#allocation11], %s196
          %s199 = sshll.u32 %s3, 4
          %s200 = int_to_ptr.vmem [resolvable:$true] %s199
          %202 = dma.vmem_to_smem %s200, 16, [#allocation10], [#allocation11]
        $region24: #{tpu_custom_call.1} parent=11 // pred_fallthru
          _
        // Predicated region
        $region25: #{tpu_custom_call.1} parent=11 // pred_check
          %p203 = pneg %p131
        $region26: #{tpu_custom_call.1} parent=11 // pred_check_branch
          %205 = sbr.rel (%p203) target = $region28
        $region27: #{tpu_custom_call.1} parent=11 // pred_region
          _
        $region28: #{tpu_custom_call.1} parent=11 // pred_fallthru
          _
      $region12: #{tpu_custom_call.1} parent=5 // pred_fallthru
        _
      %p206 = scmp.lt.s32.totalorder %s21, 3
      // Predicated region
      $region29: #{tpu_custom_call.1} parent=5 // pred_check
        %p207 = pneg %p206
      $region30: #{tpu_custom_call.1} parent=5 // pred_check_branch
        %209 = sbr.rel (%p207) target = $region32
      $region31: #{tpu_custom_call.1} parent=5 // pred_region
        // Predicated region
        $region33: #{tpu_custom_call.1} parent=31 // pred_check
          %p210 = pneg %p41
        $region34: #{tpu_custom_call.1} parent=31 // pred_check_branch
          %212 = sbr.rel (%p210) target = $region36
        $region35: #{tpu_custom_call.1} parent=31 // pred_region
          %s213 = sand.u32 %s31, 1
          %s214 = scalar_lea.sflag [#allocation4], %s213
          %s215 = sand.u32 %s31, 1
          %s216 = smul.addr %s215, 8
          %s217 = scalar_lea.vmem [#allocation3], %s216
          %s219 = ssub.s32 128, 128
          %220 = vsyncadd %s214, %s219
          %s221 = smul.addr %s21, 128
          %s222 = scalar_lea.hbm %s0, %s221
          %s224 = sshll.u32 %s217, 4
          %s225 = int_to_ptr.vmem [resolvable:$true] %s224
          %227 = dma.hbm_to_vmem [thread:$0]  %s222, 128, %s225, %s214
        $region36: #{tpu_custom_call.1} parent=31 // pred_fallthru
          _
      $region32: #{tpu_custom_call.1} parent=5 // pred_fallthru
        _
      %p228 = scmp.le.s32.totalorder 1, %s21
      %p229 = scmp.lt.s32.totalorder %s21, 4
      %p230 = pnand %p228, %p229
      %p231 = pneg %p230
      // Predicated region
      $region37: #{tpu_custom_call.1} parent=5 // pred_check
        _
      $region38: #{tpu_custom_call.1} parent=5 // pred_check_branch
        %233 = sbr.rel (%p230) target = $region40
      $region39: #{tpu_custom_call.1} parent=5 // pred_region
        %s234 = ssub.s32 %s21, 1
        %s235 = sand.u32 %s34, 1
        %s236 = scalar_lea.sflag [#allocation4], %s235
        %s237 = sand.u32 %s34, 1
        %s238 = smul.addr %s237, 8
        %s239 = scalar_lea.vmem [#allocation3], %s238
        // Predicated region
        $region41: #{tpu_custom_call.1} parent=39 // pred_check
          %p240 = pneg %p47
        $region42: #{tpu_custom_call.1} parent=39 // pred_check_branch
          %242 = sbr.rel (%p240) target = $region44
        $region43: #{tpu_custom_call.1} parent=39 // pred_region
          %243 = dma.done %s236, 128
        $region44: #{tpu_custom_call.1} parent=39 // pred_fallthru
          _
        // Predicated region
        $region45: #{tpu_custom_call.1} parent=39 // pred_check
          %p244 = pneg %p68
        $region46: #{tpu_custom_call.1} parent=39 // pred_check_branch
          %246 = sbr.rel (%p244) target = $region48
        $region47: #{tpu_custom_call.1} parent=39 // pred_region
          %247 = dma.done [#allocation6], 128
        $region48: #{tpu_custom_call.1} parent=39 // pred_fallthru
          _
        // Predicated region
        $region49: #{tpu_custom_call.1} parent=39 // pred_check
          %p248 = pneg %p89
        $region50: #{tpu_custom_call.1} parent=39 // pred_check_branch
          %250 = sbr.rel (%p248) target = $region52
        $region51: #{tpu_custom_call.1} parent=39 // pred_region
          %251 = dma.done [#allocation7], 16
        $region52: #{tpu_custom_call.1} parent=39 // pred_fallthru
          _
        // Predicated region
        $region53: #{tpu_custom_call.1} parent=39 // pred_check
          %p252 = pneg %p110
        $region54: #{tpu_custom_call.1} parent=39 // pred_check_branch
          %254 = sbr.rel (%p252) target = $region56
        $region55: #{tpu_custom_call.1} parent=39 // pred_region
          %255 = dma.done [#allocation11], 16
        $region56: #{tpu_custom_call.1} parent=39 // pred_fallthru
          _
        %256 = sfence
        %s257 = sand.u32 %s34, 1
        %s258 = scalar_lea.sflag [#allocation4], %s257
        %s259 = sand.u32 %s34, 1
        %s260 = smul.addr %s259, 8
        %s261 = scalar_lea.vmem [#allocation3], %s260
        %p262 = pneg %p47
        %p263 = pneg %p44
        %p264 = pneg %p68
        %p265 = pneg %p65
        %p266 = pneg %p89
        %p267 = pneg %p86
        %p268 = pneg %p110
        %p269 = pneg %p107
        %p270 = pneg %p131
        %p271 = pneg %p128
        %p272 = pneg %p157
        %p273 = pneg %p154
        %s274 = sand.u32 %s144, 1
        %s275 = scalar_lea.sflag [#allocation5], %s274
        %s276 = sand.u32 %s144, 1
        %s277 = scalar_lea.vmem [#allocation12], %s276
        %v278 = vld [vmem:[%s239] sm:$0x1]
        %v279 = vld [vmem:[%s239 + $0x1] sm:$0x1]
        %v280 = vld [vmem:[%s239 + $0x2] sm:$0x1]
        %v281 = vld [vmem:[%s239 + $0x3] sm:$0x1]
        %v282 = vld [vmem:[%s239 + $0x4] sm:$0x1]
        %v283 = vld [vmem:[%s239 + $0x5] sm:$0x1]
        %s284 = sld [smem:[#allocation9]]
        %v285 = vstv %s284
        %v286 = vadd.f32 %v285, 0.0
        %s287 = sld [smem:[#allocation8]]
        %v288 = vstv %s287
        %v289 = vmul.f32 %v288, %v278
        %v290 = vadd.f32 %v286, %v289
        %s291 = sld [smem:[#allocation8 + $0x1]]
        %v292 = vstv %s291
        %v293 = vmul.f32 %v292, %v279
        %v294 = vadd.f32 %v290, %v293
        %s295 = sld [smem:[#allocation8 + $0x2]]
        %v296 = vstv %s295
        %v297 = vmul.f32 %v296, %v280
        %v298 = vadd.f32 %v294, %v297
        %s299 = sld [smem:[#allocation8 + $0x3]]
        %v300 = vstv %s299
        %v301 = vmul.f32 %v300, %v281
        %v302 = vadd.f32 %v298, %v301
        %s303 = sld [smem:[#allocation8 + $0x4]]
        %v304 = vstv %s303
        %v305 = vmul.f32 %v304, %v282
        %v306 = vadd.f32 %v302, %v305
        %s307 = sld [smem:[#allocation8 + $0x5]]
        %v308 = vstv %s307
        %v309 = vmul.f32 %v308, %v283
        %v310 = vadd.f32 %v306, %v309
        %v311 = vmax.f32 %v310, 0.0
        %s312 = sld [smem:[#allocation9 + $0x1]]
        %v313 = vstv %s312
        %v314 = vadd.f32 %v313, 0.0
        %s315 = sld [smem:[#allocation8 + $0x80]]
        %v316 = vstv %s315
        %v317 = vmul.f32 %v316, %v278
        %v318 = vadd.f32 %v314, %v317
        %s319 = sld [smem:[#allocation8 + $0x81]]
        %v320 = vstv %s319
        %v321 = vmul.f32 %v320, %v279
        %v322 = vadd.f32 %v318, %v321
        %s323 = sld [smem:[#allocation8 + $0x82]]
        %v324 = vstv %s323
        %v325 = vmul.f32 %v324, %v280
        %v326 = vadd.f32 %v322, %v325
        %s327 = sld [smem:[#allocation8 + $0x83]]
        %v328 = vstv %s327
        %v329 = vmul.f32 %v328, %v281
        %v330 = vadd.f32 %v326, %v329
        %s331 = sld [smem:[#allocation8 + $0x84]]
        %v332 = vstv %s331
        %v333 = vmul.f32 %v332, %v282
        %v334 = vadd.f32 %v330, %v333
        %s335 = sld [smem:[#allocation8 + $0x85]]
        %v336 = vstv %s335
        %v337 = vmul.f32 %v336, %v283
        %v338 = vadd.f32 %v334, %v337
        %v339 = vmax.f32 %v338, 0.0
        %s340 = sld [smem:[#allocation9 + $0x2]]
        %v341 = vstv %s340
        %v342 = vadd.f32 %v341, 0.0
        %s343 = sld [smem:[#allocation8 + $0x100]]
        %v344 = vstv %s343
        %v345 = vmul.f32 %v344, %v278
        %v346 = vadd.f32 %v342, %v345
        %s347 = sld [smem:[#allocation8 + $0x101]]
        %v348 = vstv %s347
        %v349 = vmul.f32 %v348, %v279
        %v350 = vadd.f32 %v346, %v349
        %s351 = sld [smem:[#allocation8 + $0x102]]
        %v352 = vstv %s351
        %v353 = vmul.f32 %v352, %v280
        %v354 = vadd.f32 %v350, %v353
        %s355 = sld [smem:[#allocation8 + $0x103]]
        %v356 = vstv %s355
        %v357 = vmul.f32 %v356, %v281
        %v358 = vadd.f32 %v354, %v357
        %s359 = sld [smem:[#allocation8 + $0x104]]
        %v360 = vstv %s359
        %v361 = vmul.f32 %v360, %v282
        %v362 = vadd.f32 %v358, %v361
        %s363 = sld [smem:[#allocation8 + $0x105]]
        %v364 = vstv %s363
        %v365 = vmul.f32 %v364, %v283
        %v366 = vadd.f32 %v362, %v365
        %v367 = vmax.f32 %v366, 0.0
        %s368 = sld [smem:[#allocation9 + $0x3]]
        %v369 = vstv %s368
        %v370 = vadd.f32 %v369, 0.0
        %s371 = sld [smem:[#allocation8 + $0x180]]
        %v372 = vstv %s371
        %v373 = vmul.f32 %v372, %v278
        %v374 = vadd.f32 %v370, %v373
        %s375 = sld [smem:[#allocation8 + $0x181]]
        %v376 = vstv %s375
        %v377 = vmul.f32 %v376, %v279
        %v378 = vadd.f32 %v374, %v377
        %s379 = sld [smem:[#allocation8 + $0x182]]
        %v380 = vstv %s379
        %v381 = vmul.f32 %v380, %v280
        %v382 = vadd.f32 %v378, %v381
        %s383 = sld [smem:[#allocation8 + $0x183]]
        %v384 = vstv %s383
        %v385 = vmul.f32 %v384, %v281
        %v386 = vadd.f32 %v382, %v385
        %s387 = sld [smem:[#allocation8 + $0x184]]
        %v388 = vstv %s387
        %v389 = vmul.f32 %v388, %v282
        %v390 = vadd.f32 %v386, %v389
        %s391 = sld [smem:[#allocation8 + $0x185]]
        %v392 = vstv %s391
        %v393 = vmul.f32 %v392, %v283
        %v394 = vadd.f32 %v390, %v393
        %v395 = vmax.f32 %v394, 0.0
        %s396 = sld [smem:[#allocation9 + $0x4]]
        %v397 = vstv %s396
        %v398 = vadd.f32 %v397, 0.0
        %s399 = sld [smem:[#allocation8 + $0x200]]
        %v400 = vstv %s399
        %v401 = vmul.f32 %v400, %v278
        %v402 = vadd.f32 %v398, %v401
        %s403 = sld [smem:[#allocation8 + $0x201]]
        %v404 = vstv %s403
        %v405 = vmul.f32 %v404, %v279
        %v406 = vadd.f32 %v402, %v405
        %s407 = sld [smem:[#allocation8 + $0x202]]
        %v408 = vstv %s407
        %v409 = vmul.f32 %v408, %v280
        %v410 = vadd.f32 %v406, %v409
        %s411 = sld [smem:[#allocation8 + $0x203]]
        %v412 = vstv %s411
        %v413 = vmul.f32 %v412, %v281
        %v414 = vadd.f32 %v410, %v413
        %s415 = sld [smem:[#allocation8 + $0x204]]
        %v416 = vstv %s415
        %v417 = vmul.f32 %v416, %v282
        %v418 = vadd.f32 %v414, %v417
        %s419 = sld [smem:[#allocation8 + $0x205]]
        %v420 = vstv %s419
        %v421 = vmul.f32 %v420, %v283
        %v422 = vadd.f32 %v418, %v421
        %v423 = vmax.f32 %v422, 0.0
        %s424 = sld [smem:[#allocation9 + $0x5]]
        %v425 = vstv %s424
        %v426 = vadd.f32 %v425, 0.0
        %s427 = sld [smem:[#allocation8 + $0x280]]
        %v428 = vstv %s427
        %v429 = vmul.f32 %v428, %v278
        %v430 = vadd.f32 %v426, %v429
        %s431 = sld [smem:[#allocation8 + $0x281]]
        %v432 = vstv %s431
        %v433 = vmul.f32 %v432, %v279
        %v434 = vadd.f32 %v430, %v433
        %s435 = sld [smem:[#allocation8 + $0x282]]
        %v436 = vstv %s435
        %v437 = vmul.f32 %v436, %v280
        %v438 = vadd.f32 %v434, %v437
        %s439 = sld [smem:[#allocation8 + $0x283]]
        %v440 = vstv %s439
        %v441 = vmul.f32 %v440, %v281
        %v442 = vadd.f32 %v438, %v441
        %s443 = sld [smem:[#allocation8 + $0x284]]
        %v444 = vstv %s443
        %v445 = vmul.f32 %v444, %v282
        %v446 = vadd.f32 %v442, %v445
        %s447 = sld [smem:[#allocation8 + $0x285]]
        %v448 = vstv %s447
        %v449 = vmul.f32 %v448, %v283
        %v450 = vadd.f32 %v446, %v449
        %v451 = vmax.f32 %v450, 0.0
        %s452 = sld [smem:[#allocation2]]
        %v453 = vstv %s452
        %v454 = vadd.f32 %v453, 0.0
        %s455 = sld [smem:[#allocation10]]
        %v456 = vstv %s455
        %v457 = vmul.f32 %v456, %v311
        %v458 = vadd.f32 %v454, %v457
        %s459 = sld [smem:[#allocation10 + $0x1]]
        %v460 = vstv %s459
        %v461 = vmul.f32 %v460, %v339
        %v462 = vadd.f32 %v458, %v461
        %s463 = sld [smem:[#allocation10 + $0x2]]
        %v464 = vstv %s463
        %v465 = vmul.f32 %v464, %v367
        %v466 = vadd.f32 %v462, %v465
        %s467 = sld [smem:[#allocation10 + $0x3]]
        %v468 = vstv %s467
        %v469 = vmul.f32 %v468, %v395
        %v470 = vadd.f32 %v466, %v469
        %s471 = sld [smem:[#allocation10 + $0x4]]
        %v472 = vstv %s471
        %v473 = vmul.f32 %v472, %v423
        %v474 = vadd.f32 %v470, %v473
        %s475 = sld [smem:[#allocation10 + $0x5]]
        %v476 = vstv %s475
        %v477 = vmul.f32 %v476, %v451
        %v478 = vadd.f32 %v474, %v477
        %479 = vst [vmem:[%s277] sm:$0x1] %v478
        %s480 = sand.u32 %s144, 1
        %s481 = scalar_lea.sflag [#allocation5], %s480
        %s482 = sand.u32 %s144, 1
        %s483 = scalar_lea.vmem [#allocation12], %s482
        // Predicated region
        $region57: #{tpu_custom_call.1} parent=39 // pred_check
          %p484 = pneg %p154
        $region58: #{tpu_custom_call.1} parent=39 // pred_check_branch
          %486 = sbr.rel (%p484) target = $region60
        $region59: #{tpu_custom_call.1} parent=39 // pred_region
          %s488 = ssub.s32 16, 16
          %489 = vsyncadd %s481, %s488
          %s490 = smul.addr %s26, 16
          %s491 = scalar_lea.hbm %s5, %s490
          %s493 = sshll.u32 %s483, 4
          %s494 = int_to_ptr.vmem [resolvable:$true] %s493
          %496 = dma.vmem_to_hbm [thread:$0]  %s494, 16, %s491, %s481
        $region60: #{tpu_custom_call.1} parent=39 // pred_fallthru
          _
      $region40: #{tpu_custom_call.1} parent=5 // pred_fallthru
        _
      %p497 = scmp.le.s32.totalorder 2, %s21
      // Predicated region
      $region61: #{tpu_custom_call.1} parent=5 // pred_check
        %p498 = pneg %p497
      $region62: #{tpu_custom_call.1} parent=5 // pred_check_branch
        %500 = sbr.rel (%p498) target = $region64
      $region63: #{tpu_custom_call.1} parent=5 // pred_region
        %s501 = ssub.s32 %s21, 2
        // Predicated region
        $region65: #{tpu_custom_call.1} parent=63 // pred_check
          %p502 = pneg %p160
        $region66: #{tpu_custom_call.1} parent=63 // pred_check_branch
          %504 = sbr.rel (%p502) target = $region68
        $region67: #{tpu_custom_call.1} parent=63 // pred_region
          %s505 = sand.u32 %s145, 1
          %s506 = scalar_lea.sflag [#allocation5], %s505
          %s507 = sand.u32 %s145, 1
          %s508 = scalar_lea.vmem [#allocation12], %s507
          %509 = dma.done %s506, 16
        $region68: #{tpu_custom_call.1} parent=63 // pred_fallthru
          _
      $region64: #{tpu_custom_call.1} parent=5 // pred_fallthru
        _
    $region6: #{tpu_custom_call.1} parent=1 // loop_footer
      %s25 = sadd.s32 1, %s21
    $region7: #{tpu_custom_call.1} parent=1 // loop_footer_branch
      %20 = sbr.rel target = $region3
    $region8: #{tpu_custom_call.1} parent=1 // loop_exit
      _
    %510 = vsyncpa [#allocation4], 1
    %s511 = scalar_lea.sflag [#allocation4], 1
    %512 = vsyncpa %s511, 1
    %513 = vsyncpa [#allocation5], 1
    %s514 = scalar_lea.sflag [#allocation5], 1
    %515 = vsyncpa %s514, 1
    %516 = vsyncpa [#allocation6], 1
    %s517 = scalar_lea.sflag [#allocation6], 1
    %518 = vsyncpa %s517, 1
    %519 = vsyncpa [#allocation7], 1
    %s520 = scalar_lea.sflag [#allocation7], 1
    %521 = vsyncpa %s520, 1
    %522 = vsyncpa [#allocation11], 1

</llo_original>
